<compile_context>
chip_gen: v7x
topology: tpu7x:2x2x1
jax: 0.10.0
libtpu: 0.0.40
codegen_flags: <defaults>
</compile_context>

<pallas_src>
import jax
import jax.numpy as jnp
from jax.experimental import pallas as pl
from jax.experimental.pallas import tpu as pltpu

# ---- "Config" constants (consistent with the module) -------------------------
NUM_LABELS = 2        # Config.num_labels (hard-wired by the [1-os, os] row assignment;
                      # num_labels > 2 would be a shape error in the PyTorch code anyway)
DIM_ALPACA = 8        # Config.dim_alpaca
DIM_CFC = 8           # Config.dim_cfc
DIM_ENSEMBLE = 4      # Config.dim_ensemble
OS_OFFSET = 0.12      # constant subtracted in get_alpaca (eval_only branch)


# ---- deterministic parameter init (module __init__ shapes; UNUSED in forward) -
def init_params(key):
    ks = jax.random.split(key, 6)
    params = {
        "alpaca_classifier_w": jax.random.normal(ks[0], (NUM_LABELS, 256), jnp.float32) * 0.02,
        "alpaca_classifier_b": jnp.zeros((NUM_LABELS,), jnp.float32),
        "alpaca_intermediate_w": jax.random.normal(ks[1], (256, DIM_ALPACA), jnp.float32) * 0.02,
        "alpaca_intermediate_b": jnp.zeros((256,), jnp.float32),
        "cfc_classifier_w": jax.random.normal(ks[2], (NUM_LABELS, 1024), jnp.float32) * 0.02,
        "cfc_classifier_b": jnp.zeros((NUM_LABELS,), jnp.float32),
        "cfc_intermediate_w": jax.random.normal(ks[3], (1024, DIM_CFC + 1), jnp.float32) * 0.02,
        "cfc_intermediate_b": jnp.zeros((1024,), jnp.float32),
        "ensemble_classifier_w": jax.random.normal(ks[4], (NUM_LABELS, 48), jnp.float32) * 0.02,
        "ensemble_classifier_b": jnp.zeros((NUM_LABELS,), jnp.float32),
        "ensemble_intermediate_w": jax.random.normal(ks[5], (48, DIM_ENSEMBLE), jnp.float32) * 0.02,
        "ensemble_intermediate_b": jnp.zeros((48,), jnp.float32),
        # TODO(synk): LSTM weights (ensemble_lstm) omitted -- never touched by forward.
    }
    return params


# ---- Pallas kernel (eval_only=True path only) ---------------------------------
def alpaca_eval_kernel(alpaca_ref, out_ref):
    """out[i] = [1 - (alpaca[i, -1] - 0.12), alpaca[i, -1] - 0.12]  (float32)."""
    d = alpaca_ref.shape[-1]
    # Read only the last column; cast in-vreg (covers bf16 inputs with no extra
    # HBM copy).  PyTorch's torch.zeros(...) makes the eval output float32.
    os = alpaca_ref[:, d - 1 : d].astype(jnp.float32) - OS_OFFSET   # (B, 1)
    out_ref[:, 0:1] = 1.0 - os
    out_ref[:, 1:2] = os


# ---- wrapper (forward) ---------------------------------------------------------
def credibility_classifier_alpaca_forward(
    input_ids, token_type_ids, attention_mask, labels, alpaca, *, eval_only=False
):
    """Returns (logits_or_alpaca, labels), matching CredibilityClassifierAlpaca.forward."""
    if not eval_only:
        # get_alpaca(eval_only=False) is the identity on kwargs['alpaca'];
        # returning it directly avoids a pointless Pallas round trip.
        return alpaca, labels

    b = alpaca.shape[0]
    logits = pl.pallas_call(
        alpaca_eval_kernel,
        out_shape=jax.ShapeDtypeStruct((b, NUM_LABELS), jnp.float32),
        in_specs=[pl.BlockSpec(memory_space=pltpu.MemorySpace.VMEM)],
        out_specs=pl.BlockSpec(memory_space=pltpu.MemorySpace.VMEM),
    )(alpaca)
    return logits, labels


# ---- demo / check --------------------------------------------------------------
if __name__ == "__main__":
    key = jax.random.PRNGKey(0)
    k_alpaca, k_labels, k_params = jax.random.split(key, 3)

    B = 8
    # Unused-in-forward params (init'd deterministically to mirror __init__).
    _params = init_params(k_params)

    # Inputs (input_ids/token_type_ids/attention_mask are ignored by forward).
    S = 16
    input_ids = jnp.zeros((B, S), jnp.int32)
    token_type_ids = jnp.zeros((B, S), jnp.int32)
    attention_mask = jnp.ones((B, S), jnp.int32)
    labels = jax.random.randint(k_labels, (B,), 0, NUM_LABELS, jnp.int32)
    alpaca = jax.random.uniform(k_alpaca, (B, DIM_ALPACA), jnp.float32)

    # eval_only=True path (the actual Pallas compute).
    logits, labels_out = credibility_classifier_alpaca_forward(
        input_ids, token_type_ids, attention_mask, labels, alpaca, eval_only=True
    )
    logits = jax.block_until_ready(logits)

    os_ref = alpaca[:, -1] - OS_OFFSET
    ref = jnp.stack([1.0 - os_ref, os_ref], axis=1)
    assert logits.shape == (B, NUM_LABELS)
    assert logits.dtype == jnp.float32
    assert jnp.allclose(logits, ref, atol=1e-6), "eval_only path mismatch"
    assert jnp.array_equal(labels_out, labels)

    # eval_only=False path (identity pass-through; no kernel launch).
    passthru, labels_out2 = credibility_classifier_alpaca_forward(
        input_ids, token_type_ids, attention_mask, labels, alpaca, eval_only=False
    )
    passthru = jax.block_until_ready(passthru)
    assert passthru.dtype == alpaca.dtype
    assert jnp.allclose(passthru, alpaca)
    assert jnp.array_equal(labels_out2, labels)

    print("KERNEL_OK")
</pallas_src>

<mosaic_0001>
module attributes {stable_mosaic.version = 11 : i64} {
  func.func @alpaca_eval_kernel(%arg0: memref<8x8xf32, #tpu.memory_space<vmem>>, %arg1: memref<8x2xf32, #tpu.memory_space<vmem>>) attributes {dimension_semantics = [], scalar_prefetch = 0 : i64, scratch_operands = 0 : i64, tpu.core_type = #tpu.core_type<tc>} {
    %c0 = arith.constant 0 : index
    %c7 = arith.constant 7 : index
    %0 = vector.load %arg0[%c0, %c7] : memref<8x8xf32, #tpu.memory_space<vmem>>, vector<8x1xf32>
    %cst = arith.constant 1.200000e-01 : f32
    %1 = vector.broadcast %cst : f32 to vector<8x1xf32>
    %2 = arith.subf %0, %1 : vector<8x1xf32>
    %cst_0 = arith.constant 1.000000e+00 : f32
    %3 = vector.broadcast %cst_0 : f32 to vector<8x1xf32>
    %4 = arith.subf %3, %2 : vector<8x1xf32>
    %c0_1 = arith.constant 0 : index
    %c0_2 = arith.constant 0 : index
    %5 = vector.load %arg1[%c0_1, %c0_2] : memref<8x2xf32, #tpu.memory_space<vmem>>, vector<8x1xf32>
    tpu.vector_store %arg1[%c0_1, %c0_2], %4 {strides = array<i32>} : memref<8x2xf32, #tpu.memory_space<vmem>>, vector<8x1xf32>,
    %c0_3 = arith.constant 0 : index
    %c1 = arith.constant 1 : index
    %6 = vector.load %arg1[%c0_3, %c1] : memref<8x2xf32, #tpu.memory_space<vmem>>, vector<8x1xf32>
    tpu.vector_store %arg1[%c0_3, %c1], %2 {strides = array<i32>} : memref<8x2xf32, #tpu.memory_space<vmem>>, vector<8x1xf32>,
    return
  }
}

</mosaic_0001>

<llo_original>
// kernel: tpu_custom_call.1
$region0: #{tpu_custom_call.1}
  #allocation0 [shape = 'u32[]', space=smem, size = 0x4, offset = 0x4, fixed_abs, tag = 'smem constant byte address 0x4 - core index']
  #allocation1 [shape = 'u32[144,128]{1,0:T(1,128)}', space=vmem, size = 0x12000, scoped, tag = 'internal scratch']
  %s0 = inlined_call_operand.hbm [shape: f32[8,8], index: 0, kind: input, shape index: {}]
  %s1 = inlined_call_operand.vmem [shape: f32[8,2], index: 1, kind: output, shape index: {}]
  %s2 = sld [smem:[#allocation0]]
  $region18: #{tpu_custom_call.1} parent=0
    _
  %s4 = ssub.s32 1, %s2
  %s5 = scalar_select 0, %s4, %s2
  $region1: #{tpu_custom_call.1} parent=0
    #allocation2 [shape = 'u8[4096]{0}', space=vmem, size = 0x1000, scoped, tag = 'input window, operand 0, single buffered']
    #allocation3 [shape = 's32[1]{0}', space=sflag, size = 0x4, scoped, tag = 'scoped memory for tpu_custom_call.1']
    %6 = vsyncpa [#allocation3], 0
    // Predicated region
    $region2: #{tpu_custom_call.1} parent=1 // pred_check
      _
    $region3: #{tpu_custom_call.1} parent=1 // pred_check_branch
      %8 = sbr.rel (0) target = $region5
    $region4: #{tpu_custom_call.1} parent=1 // pred_region
      %s10 = ssub.s32 128, 128
      %11 = vsyncadd [#allocation3], %s10
      %s13 = sshll.u32 [#allocation2], 4
      %s14 = int_to_ptr.vmem [resolvable:$true] %s13
      %16 = dma.hbm_to_vmem [thread:$0]  %s0, 128, %s14, [#allocation3]
    $region5: #{tpu_custom_call.1} parent=1 // pred_fallthru
      _
    // Predicated region
    $region6: #{tpu_custom_call.1} parent=1 // pred_check
      _
    $region7: #{tpu_custom_call.1} parent=1 // pred_check_branch
      %18 = sbr.rel (0) target = $region9
    $region8: #{tpu_custom_call.1} parent=1 // pred_region
      %19 = dma.done [#allocation3], 128
    $region9: #{tpu_custom_call.1} parent=1 // pred_fallthru
      _
    %v20 = vld [vmem:[#allocation2] sm:$0xff]
    %v21 = vsub.f32 %v20, 0.12
    %v22 = vsub.f32 1.0, %v21
    %24 = vrot.lane.b32.xlu0 %v22, 121
    %v25 = vpop.permute.xlu0 %24
    %vm27 = vcmask 7168
    %28 = vst.msk [vmem:[%s1] sm:$0xff] %vm27, %v25
    %30 = vrot.lane.b32.xlu0 %v21, 122
    %v31 = vpop.permute.xlu0 %30
    %vm33 = vcmask 15368
    %34 = vst.msk [vmem:[%s1] sm:$0xff] %vm33, %v31
    // Predicated region
    $region10: #{tpu_custom_call.1} parent=1 // pred_check
      _
    $region11: #{tpu_custom_call.1} parent=1 // pred_check_branch
      %36 = sbr.rel (0) target = $region13
    $region12: #{tpu_custom_call.1} parent=1 // pred_region
      _
    $region13: #{tpu_custom_call.1} parent=1 // pred_fallthru
      _
    // Predicated region
    $region14: #{tpu_custom_call.1} parent=1 // pred_check
      _
    $region15: #{tpu_custom_call.1} parent=1 // pred_check_branch
      %38 = sbr.rel (0) target = $region17
    $region16: #{tpu_custom_call.1} parent=1 // pred_region
      _
    $region17: #{tpu_custom_call.1} parent=1 // pred_fallthru
      _
    %39 = vsyncpa [#allocation3], 1

</llo_original>
